<compile_context>
chip_gen: v5e
topology: v5e:2x2
jax: 0.10.0
libtpu: 0.0.40
codegen_flags: <defaults>
</compile_context>

<pallas_src>
import jax
import jax.numpy as jnp
from jax.experimental import pallas as pl
from jax.experimental.pallas import tpu as pltpu


HALO = 128  # lane halo on each side of an M tile; covers |tap offset| = W+3 <= 128


def _round_up(x, m):
    return ((x + m - 1) // m) * m


def _make_kernel(tm, offsets, cout1):
    """Fused kernel for a given M-tile size and static conv-tap lane offsets."""

    def kernel(xl_ref, xc_ref, xr_ref, w1_ref, w2T_ref, b2_ref, o_ref, xw_ref):
        # xl_ref : (Cpad, 128)      left halo (bf16)
        # xc_ref : (Cpad, TM)       current tile (bf16)
        # xr_ref : (Cpad, 128)      right halo (bf16)
        # w1_ref : (9, 24, Cpad)    conv-transpose taps (bf16, bias in col 42 of tap 4)
        # w2T_ref: (2, 24)  f32     1x1 conv weight
        # b2_ref : (2, 1)   f32
        # o_ref  : (2, TM)  f32     lane-dense output tile
        # xw_ref : (Cpad, TM+256)   VMEM scratch, haloed activation window
        xw_ref[:, :HALO] = xl_ref[...]
        xw_ref[:, HALO:HALO + tm] = xc_ref[...]
        xw_ref[:, HALO + tm:] = xr_ref[...]
        xw = xw_ref[...]

        # 9 accumulated shifted matmuls (in-kernel im2col), f32 accumulation on MXU.
        acc = jnp.zeros((cout1, tm), jnp.float32)
        for t, d in enumerate(offsets):
            acc = acc + jnp.dot(w1_ref[t], xw[:, HALO + d:HALO + d + tm],
                                preferred_element_type=jnp.float32)

        # GELU-like chain in f32: (v*0.5) * (erf(v/sqrt(2)) + 1)
        v6 = (acc * 0.5) * (jax.lax.erf(acc * 0.7071067811865476) + 1.0)

        # 1x1 conv (24 -> 2), lane-dense store.
        o_ref[...] = (jnp.dot(w2T_ref[...], v6, preferred_element_type=jnp.float32)
                      + b2_ref[...])

    return kernel


def model_forward(x_nchw, wt, b1, w2, b2, tm=2048):
    """x_nchw: (N, 42, H, W); wt: (42, 24, 3, 3); b1: (24,); w2: (2, 24, 1, 1); b2: (2,)."""
    N, Cin, H, W = x_nchw.shape
    Cout1 = wt.shape[1]          # 24
    Cout2 = w2.shape[0]          # 2
    assert W + 3 <= HALO, "spatial width too large for the 128-lane halo"

    Hp, Wp = H + 2, W + 2
    Mp = N * Hp * Wp                        # padded-domain spatial positions
    Cin_pad = _round_up(Cin + 1, 16)        # 42 data rows + ones-row (bias) -> 48

    # --- M tiling: big lane-dense tiles; guarantee >=2 grid steps when possible ---
    m128 = _round_up(Mp, 128)
    tm_eff = min(tm, m128)
    if m128 >= 256:
        tm_eff = min(tm_eff, _round_up(m128 // 2, 128))   # >=2 tiles for megacore
    tm_eff = _round_up(tm_eff, 128)
    M_pad = _round_up(Mp, tm_eff)
    n_tiles = M_pad // tm_eff
    blocks_per_tile = tm_eff // 128

    # --- activation: channel-major, spatially zero-padded, bf16, ones-row for bias ---
    x_sp = jnp.pad(x_nchw, ((0, 0), (0, 0), (1, 1), (1, 1)))               # (N, Cin, Hp, Wp)
    xcm = x_sp.transpose(1, 0, 2, 3).reshape(Cin, Mp).astype(jnp.bfloat16)  # (Cin, Mp)
    ones_row = jnp.ones((1, Mp), jnp.bfloat16)
    pad_rows = jnp.zeros((Cin_pad - Cin - 1, Mp), jnp.bfloat16)
    xcm_p = jnp.concatenate([xcm, ones_row, pad_rows], axis=0)             # (Cin_pad, Mp)
    # tm_eff zero columns on the left keep halo/tile index maps block-aligned;
    # right pad covers the M tail plus the last right halo.
    xp = jnp.pad(xcm_p, ((0, 0), (tm_eff, (M_pad - Mp) + tm_eff)))         # (Cin_pad, M_pad + 2*tm_eff)

    # --- weights: ConvTranspose2d(s=1, p=1) == Conv2d(p=1) with flipped kernel ---
    w_eq = jnp.flip(wt, axis=(2, 3)).transpose(1, 0, 2, 3)                 # (24, 42, 3, 3)
    taps, offsets = [], []
    for kh in range(3):
        for kw in range(3):
            tap = jnp.zeros((Cout1, Cin_pad), jnp.float32)
            tap = tap.at[:, :Cin].set(w_eq[:, :, kh, kw])
            if kh == 1 and kw == 1:
                tap = tap.at[:, Cin].set(b1)           # bias rides the ones-row, added once
            taps.append(tap)
            offsets.append((kh - 1) * Wp + (kw - 1))   # static lane offset of this tap
    w1 = jnp.stack(taps, axis=0).astype(jnp.bfloat16)                      # (9, 24, Cin_pad)
    w2T = w2.reshape(Cout2, Cout1).astype(jnp.float32)                     # (2, 24)
    b2_col = b2.reshape(Cout2, 1).astype(jnp.float32)

    kernel = _make_kernel(tm_eff, tuple(offsets), Cout1)

    out_T = pl.pallas_call(
        kernel,
        out_shape=jax.ShapeDtypeStruct((Cout2, M_pad), jnp.float32),
        grid=(n_tiles,),
        in_specs=[
            # left halo, current tile, right halo — three Blocked views of the SAME array
            pl.BlockSpec((Cin_pad, 128), lambda i: (0, (i + 1) * blocks_per_tile - 1)),
            pl.BlockSpec((Cin_pad, tm_eff), lambda i: (0, i + 1)),
            pl.BlockSpec((Cin_pad, 128), lambda i: (0, (i + 2) * blocks_per_tile)),
            # tiny resident weights
            pl.BlockSpec((9, Cout1, Cin_pad), lambda i: (0, 0, 0)),
            pl.BlockSpec((Cout2, Cout1), lambda i: (0, 0)),
            pl.BlockSpec((Cout2, 1), lambda i: (0, 0)),
        ],
        out_specs=pl.BlockSpec((Cout2, tm_eff), lambda i: (0, i)),
        scratch_shapes=[pltpu.VMEM((Cin_pad, tm_eff + 2 * HALO), jnp.bfloat16)],
        compiler_params=pltpu.CompilerParams(
            dimension_semantics=("parallel",),     # shards grid across v7x's 2 TCs
            vmem_limit_bytes=(32 if tm_eff <= 2048 else 64) * 1024 * 1024),
    )(xp, xp, xp, w1, w2T, b2_col)

    # drop M padding, drop the garbage border rows/cols of the padded domain
    out = out_T[:, :Mp].reshape(Cout2, N, Hp, Wp)[:, :, 1:1 + H, 1:1 + W]
    return out.transpose(1, 0, 2, 3)   # back to NCHW


def reference_forward(x, wt, b1, w2, b2):
    """Pure-JAX reference implementing the PyTorch semantics directly."""
    N, Cin, H, W = x.shape
    Cout1 = wt.shape[1]
    out_full = jnp.zeros((N, Cout1, H + 2, W + 2), jnp.float32)
    for kh in range(3):
        for kw in range(3):
            out_full = out_full.at[:, :, kh:kh + H, kw:kw + W].add(
                jnp.einsum('nihw,io->nohw', x, wt[:, :, kh, kw]))
    v1 = out_full[:, :, 1:1 + H, 1:1 + W] + b1[None, :, None, None]
    v6 = (v1 * 0.5) * (jax.scipy.special.erf(v1 * 0.7071067811865476) + 1.0)
    v7 = jnp.einsum('nchw,oc->nohw', v6, w2[:, :, 0, 0]) + b2[None, :, None, None]
    return v7


if __name__ == "__main__":
    key = jax.random.PRNGKey(0)
    k1, k2, k3, k4, k5, k6 = jax.random.split(key, 6)

    # Deterministic synthetic parameters (shapes from the module's __init__).
    wt = jax.random.normal(k1, (42, 24, 3, 3), jnp.float32) * 0.05  # ConvTranspose2d weight
    b1 = jax.random.normal(k2, (24,), jnp.float32) * 0.05           # ConvTranspose2d bias
    w2 = jax.random.normal(k3, (2, 24, 1, 1), jnp.float32) * 0.05   # Conv2d 1x1 weight
    b2 = jax.random.normal(k4, (2,), jnp.float32) * 0.05            # Conv2d bias

    # Toy shape from the PyTorch spec (single 128-lane tile).
    x1 = jax.random.normal(k5, (1, 42, 2, 5), jnp.float32)
    out1 = jax.block_until_ready(model_forward(x1, wt, b1, w2, b2))
    ref1 = jax.block_until_ready(reference_forward(x1, wt, b1, w2, b2))
    assert out1.shape == (1, 2, 2, 5), out1.shape
    assert jnp.allclose(out1, ref1, atol=2e-2, rtol=2e-2), float(jnp.max(jnp.abs(out1 - ref1)))

    # Slightly larger shape that exercises >= 2 grid tiles and the cross-tile halo.
    x2 = jax.random.normal(k6, (2, 42, 8, 16), jnp.float32)
    out2 = jax.block_until_ready(model_forward(x2, wt, b1, w2, b2))
    ref2 = jax.block_until_ready(reference_forward(x2, wt, b1, w2, b2))
    assert out2.shape == (2, 2, 8, 16), out2.shape
    assert jnp.allclose(out2, ref2, atol=2e-2, rtol=2e-2), float(jnp.max(jnp.abs(out2 - ref2)))

    print("KERNEL_OK")
</pallas_src>

<mosaic_0001>
module attributes {stable_mosaic.version = 11 : i64} {
  func.func @kernel(%arg0: i32, %arg1: memref<48x128xbf16, #tpu.memory_space<vmem>>, %arg2: memref<48x128xbf16, #tpu.memory_space<vmem>>, %arg3: memref<48x128xbf16, #tpu.memory_space<vmem>>, %arg4: memref<9x24x48xbf16, #tpu.memory_space<vmem>>, %arg5: memref<2x24xf32, #tpu.memory_space<vmem>>, %arg6: memref<2x1xf32, #tpu.memory_space<vmem>>, %arg7: memref<2x128xf32, #tpu.memory_space<vmem>>, %arg8: memref<48x384xbf16, #tpu.memory_space<vmem>>) attributes {dimension_semantics = [#tpu.dimension_semantics<parallel>], iteration_bounds = array<i64: 1>, scalar_prefetch = 0 : i64, scratch_operands = 1 : i64, tpu.core_type = #tpu.core_type<tc>, window_params = [{transform_indices = @transform_0, window_bounds = array<i64: 48, 128>}, {transform_indices = @transform_1, window_bounds = array<i64: 48, 128>}, {transform_indices = @transform_2, window_bounds = array<i64: 48, 128>}, {pipeline_mode = #tpu.pipeline_mode<synchronous>, transform_indices = @transform_3, window_bounds = array<i64: 9, 24, 48>}, {pipeline_mode = #tpu.pipeline_mode<synchronous>, transform_indices = @transform_4, window_bounds = array<i64: 2, 24>}, {pipeline_mode = #tpu.pipeline_mode<synchronous>, transform_indices = @transform_5, window_bounds = array<i64: 2, 1>}, {transform_indices = @transform_6, window_bounds = array<i64: 2, 128>}]} {
    %c0 = arith.constant 0 : index
    %c0_0 = arith.constant 0 : index
    %0 = vector.load %arg1[%c0, %c0_0] : memref<48x128xbf16, #tpu.memory_space<vmem>>, vector<48x128xbf16>
    %c0_1 = arith.constant 0 : index
    %c0_2 = arith.constant 0 : index
    %1 = vector.load %arg8[%c0_1, %c0_2] : memref<48x384xbf16, #tpu.memory_space<vmem>>, vector<48x128xbf16>
    tpu.vector_store %arg8[%c0_1, %c0_2], %0 {strides = array<i32>} : memref<48x384xbf16, #tpu.memory_space<vmem>>, vector<48x128xbf16>,
    %c0_3 = arith.constant 0 : index
    %c0_4 = arith.constant 0 : index
    %2 = vector.load %arg2[%c0_3, %c0_4] : memref<48x128xbf16, #tpu.memory_space<vmem>>, vector<48x128xbf16>
    %c0_5 = arith.constant 0 : index
    %c128 = arith.constant 128 : index
    %3 = vector.load %arg8[%c0_5, %c128] : memref<48x384xbf16, #tpu.memory_space<vmem>>, vector<48x128xbf16>
    tpu.vector_store %arg8[%c0_5, %c128], %2 {strides = array<i32>} : memref<48x384xbf16, #tpu.memory_space<vmem>>, vector<48x128xbf16>,
    %c0_6 = arith.constant 0 : index
    %c0_7 = arith.constant 0 : index
    %4 = vector.load %arg3[%c0_6, %c0_7] : memref<48x128xbf16, #tpu.memory_space<vmem>>, vector<48x128xbf16>
    %c0_8 = arith.constant 0 : index
    %c256 = arith.constant 256 : index
    %5 = vector.load %arg8[%c0_8, %c256] : memref<48x384xbf16, #tpu.memory_space<vmem>>, vector<48x128xbf16>
    tpu.vector_store %arg8[%c0_8, %c256], %4 {strides = array<i32>} : memref<48x384xbf16, #tpu.memory_space<vmem>>, vector<48x128xbf16>,
    %c0_9 = arith.constant 0 : index
    %c0_10 = arith.constant 0 : index
    %6 = vector.load %arg8[%c0_9, %c0_10] : memref<48x384xbf16, #tpu.memory_space<vmem>>, vector<48x384xbf16>
    %cst = arith.constant 0.000000e+00 : f32
    %7 = vector.broadcast %cst : f32 to vector<24x128xf32>
    %c0_11 = arith.constant 0 : index
    %c0_12 = arith.constant 0 : index
    %c0_13 = arith.constant 0 : index
    %8 = vector.load %arg4[%c0_11, %c0_12, %c0_13] : memref<9x24x48xbf16, #tpu.memory_space<vmem>>, vector<1x24x48xbf16>
    %9 = vector.shape_cast %8 : vector<1x24x48xbf16> to vector<24x48xbf16>
    %10 = vector.extract_strided_slice %6 {offsets = [0, 120], sizes = [48, 128], strides = [1, 1]} : vector<48x384xbf16> to vector<48x128xbf16>
    %cst_14 = arith.constant dense<0.000000e+00> : vector<24x128xf32>
    %11 = tpu.matmul %9, %10, %cst_14 {dimension_numbers = #tpu.dot_dimension_numbers<[1], [0], [0], [1], [0, 0, 1, 1], [], []>} : vector<24x48xbf16>, vector<48x128xbf16>, vector<24x128xf32> -> vector<24x128xf32>
    %12 = arith.addf %7, %11 : vector<24x128xf32>
    %c1 = arith.constant 1 : index
    %c0_15 = arith.constant 0 : index
    %c0_16 = arith.constant 0 : index
    %13 = vector.load %arg4[%c1, %c0_15, %c0_16] : memref<9x24x48xbf16, #tpu.memory_space<vmem>>, vector<1x24x48xbf16>
    %14 = vector.shape_cast %13 : vector<1x24x48xbf16> to vector<24x48xbf16>
    %15 = vector.extract_strided_slice %6 {offsets = [0, 121], sizes = [48, 128], strides = [1, 1]} : vector<48x384xbf16> to vector<48x128xbf16>
    %cst_17 = arith.constant dense<0.000000e+00> : vector<24x128xf32>
    %16 = tpu.matmul %14, %15, %cst_17 {dimension_numbers = #tpu.dot_dimension_numbers<[1], [0], [0], [1], [0, 0, 1, 1], [], []>} : vector<24x48xbf16>, vector<48x128xbf16>, vector<24x128xf32> -> vector<24x128xf32>
    %17 = arith.addf %12, %16 : vector<24x128xf32>
    %c2 = arith.constant 2 : index
    %c0_18 = arith.constant 0 : index
    %c0_19 = arith.constant 0 : index
    %18 = vector.load %arg4[%c2, %c0_18, %c0_19] : memref<9x24x48xbf16, #tpu.memory_space<vmem>>, vector<1x24x48xbf16>
    %19 = vector.shape_cast %18 : vector<1x24x48xbf16> to vector<24x48xbf16>
    %20 = vector.extract_strided_slice %6 {offsets = [0, 122], sizes = [48, 128], strides = [1, 1]} : vector<48x384xbf16> to vector<48x128xbf16>
    %cst_20 = arith.constant dense<0.000000e+00> : vector<24x128xf32>
    %21 = tpu.matmul %19, %20, %cst_20 {dimension_numbers = #tpu.dot_dimension_numbers<[1], [0], [0], [1], [0, 0, 1, 1], [], []>} : vector<24x48xbf16>, vector<48x128xbf16>, vector<24x128xf32> -> vector<24x128xf32>
    %22 = arith.addf %17, %21 : vector<24x128xf32>
    %c3 = arith.constant 3 : index
    %c0_21 = arith.constant 0 : index
    %c0_22 = arith.constant 0 : index
    %23 = vector.load %arg4[%c3, %c0_21, %c0_22] : memref<9x24x48xbf16, #tpu.memory_space<vmem>>, vector<1x24x48xbf16>
    %24 = vector.shape_cast %23 : vector<1x24x48xbf16> to vector<24x48xbf16>
    %25 = vector.extract_strided_slice %6 {offsets = [0, 127], sizes = [48, 128], strides = [1, 1]} : vector<48x384xbf16> to vector<48x128xbf16>
    %cst_23 = arith.constant dense<0.000000e+00> : vector<24x128xf32>
    %26 = tpu.matmul %24, %25, %cst_23 {dimension_numbers = #tpu.dot_dimension_numbers<[1], [0], [0], [1], [0, 0, 1, 1], [], []>} : vector<24x48xbf16>, vector<48x128xbf16>, vector<24x128xf32> -> vector<24x128xf32>
    %27 = arith.addf %22, %26 : vector<24x128xf32>
    %c4 = arith.constant 4 : index
    %c0_24 = arith.constant 0 : index
    %c0_25 = arith.constant 0 : index
    %28 = vector.load %arg4[%c4, %c0_24, %c0_25] : memref<9x24x48xbf16, #tpu.memory_space<vmem>>, vector<1x24x48xbf16>
    %29 = vector.shape_cast %28 : vector<1x24x48xbf16> to vector<24x48xbf16>
    %30 = vector.extract_strided_slice %6 {offsets = [0, 128], sizes = [48, 128], strides = [1, 1]} : vector<48x384xbf16> to vector<48x128xbf16>
    %cst_26 = arith.constant dense<0.000000e+00> : vector<24x128xf32>
    %31 = tpu.matmul %29, %30, %cst_26 {dimension_numbers = #tpu.dot_dimension_numbers<[1], [0], [0], [1], [0, 0, 1, 1], [], []>} : vector<24x48xbf16>, vector<48x128xbf16>, vector<24x128xf32> -> vector<24x128xf32>
    %32 = arith.addf %27, %31 : vector<24x128xf32>
    %c5 = arith.constant 5 : index
    %c0_27 = arith.constant 0 : index
    %c0_28 = arith.constant 0 : index
    %33 = vector.load %arg4[%c5, %c0_27, %c0_28] : memref<9x24x48xbf16, #tpu.memory_space<vmem>>, vector<1x24x48xbf16>
    %34 = vector.shape_cast %33 : vector<1x24x48xbf16> to vector<24x48xbf16>
    %35 = vector.extract_strided_slice %6 {offsets = [0, 129], sizes = [48, 128], strides = [1, 1]} : vector<48x384xbf16> to vector<48x128xbf16>
    %cst_29 = arith.constant dense<0.000000e+00> : vector<24x128xf32>
    %36 = tpu.matmul %34, %35, %cst_29 {dimension_numbers = #tpu.dot_dimension_numbers<[1], [0], [0], [1], [0, 0, 1, 1], [], []>} : vector<24x48xbf16>, vector<48x128xbf16>, vector<24x128xf32> -> vector<24x128xf32>
    %37 = arith.addf %32, %36 : vector<24x128xf32>
    %c6 = arith.constant 6 : index
    %c0_30 = arith.constant 0 : index
    %c0_31 = arith.constant 0 : index
    %38 = vector.load %arg4[%c6, %c0_30, %c0_31] : memref<9x24x48xbf16, #tpu.memory_space<vmem>>, vector<1x24x48xbf16>
    %39 = vector.shape_cast %38 : vector<1x24x48xbf16> to vector<24x48xbf16>
    %40 = vector.extract_strided_slice %6 {offsets = [0, 134], sizes = [48, 128], strides = [1, 1]} : vector<48x384xbf16> to vector<48x128xbf16>
    %cst_32 = arith.constant dense<0.000000e+00> : vector<24x128xf32>
    %41 = tpu.matmul %39, %40, %cst_32 {dimension_numbers = #tpu.dot_dimension_numbers<[1], [0], [0], [1], [0, 0, 1, 1], [], []>} : vector<24x48xbf16>, vector<48x128xbf16>, vector<24x128xf32> -> vector<24x128xf32>
    %42 = arith.addf %37, %41 : vector<24x128xf32>
    %c7 = arith.constant 7 : index
    %c0_33 = arith.constant 0 : index
    %c0_34 = arith.constant 0 : index
    %43 = vector.load %arg4[%c7, %c0_33, %c0_34] : memref<9x24x48xbf16, #tpu.memory_space<vmem>>, vector<1x24x48xbf16>
    %44 = vector.shape_cast %43 : vector<1x24x48xbf16> to vector<24x48xbf16>
    %45 = vector.extract_strided_slice %6 {offsets = [0, 135], sizes = [48, 128], strides = [1, 1]} : vector<48x384xbf16> to vector<48x128xbf16>
    %cst_35 = arith.constant dense<0.000000e+00> : vector<24x128xf32>
    %46 = tpu.matmul %44, %45, %cst_35 {dimension_numbers = #tpu.dot_dimension_numbers<[1], [0], [0], [1], [0, 0, 1, 1], [], []>} : vector<24x48xbf16>, vector<48x128xbf16>, vector<24x128xf32> -> vector<24x128xf32>
    %47 = arith.addf %42, %46 : vector<24x128xf32>
    %c8 = arith.constant 8 : index
    %c0_36 = arith.constant 0 : index
    %c0_37 = arith.constant 0 : index
    %48 = vector.load %arg4[%c8, %c0_36, %c0_37] : memref<9x24x48xbf16, #tpu.memory_space<vmem>>, vector<1x24x48xbf16>
    %49 = vector.shape_cast %48 : vector<1x24x48xbf16> to vector<24x48xbf16>
    %50 = vector.extract_strided_slice %6 {offsets = [0, 136], sizes = [48, 128], strides = [1, 1]} : vector<48x384xbf16> to vector<48x128xbf16>
    %cst_38 = arith.constant dense<0.000000e+00> : vector<24x128xf32>
    %51 = tpu.matmul %49, %50, %cst_38 {dimension_numbers = #tpu.dot_dimension_numbers<[1], [0], [0], [1], [0, 0, 1, 1], [], []>} : vector<24x48xbf16>, vector<48x128xbf16>, vector<24x128xf32> -> vector<24x128xf32>
    %52 = arith.addf %47, %51 : vector<24x128xf32>
    %cst_39 = arith.constant 5.000000e-01 : f32
    %53 = vector.broadcast %cst_39 : f32 to vector<24x128xf32>
    %54 = arith.mulf %52, %53 : vector<24x128xf32>
    %cst_40 = arith.constant 0.707106769 : f32
    %55 = vector.broadcast %cst_40 : f32 to vector<24x128xf32>
    %56 = arith.mulf %52, %55 : vector<24x128xf32>
    %57 = math.erf %56 : vector<24x128xf32>
    %cst_41 = arith.constant 1.000000e+00 : f32
    %58 = vector.broadcast %cst_41 : f32 to vector<24x128xf32>
    %59 = arith.addf %57, %58 : vector<24x128xf32>
    %60 = arith.mulf %54, %59 : vector<24x128xf32>
    %c0_42 = arith.constant 0 : index
    %c0_43 = arith.constant 0 : index
    %61 = vector.load %arg5[%c0_42, %c0_43] : memref<2x24xf32, #tpu.memory_space<vmem>>, vector<2x24xf32>
    %cst_44 = arith.constant dense<0.000000e+00> : vector<2x128xf32>
    %62 = tpu.matmul %61, %60, %cst_44 {dimension_numbers = #tpu.dot_dimension_numbers<[1], [0], [0], [1], [0, 0, 1, 1], [], []>} : vector<2x24xf32>, vector<24x128xf32>, vector<2x128xf32> -> vector<2x128xf32>
    %c0_45 = arith.constant 0 : index
    %c0_46 = arith.constant 0 : index
    %63 = vector.load %arg6[%c0_45, %c0_46] : memref<2x1xf32, #tpu.memory_space<vmem>>, vector<2x1xf32>
    %64 = vector.broadcast %63 : vector<2x1xf32> to vector<2x128xf32>
    %65 = arith.addf %62, %64 : vector<2x128xf32>
    %c0_47 = arith.constant 0 : index
    %c0_48 = arith.constant 0 : index
    %66 = vector.load %arg7[%c0_47, %c0_48] : memref<2x128xf32, #tpu.memory_space<vmem>>, vector<2x128xf32>
    tpu.vector_store %arg7[%c0_47, %c0_48], %65 {strides = array<i32>} : memref<2x128xf32, #tpu.memory_space<vmem>>, vector<2x128xf32>,
    return
  }
  func.func @transform_0(%arg0: i32) -> (i32, i32) {
    %c1_i32 = arith.constant 1 : i32
    %0 = arith.addi %arg0, %c1_i32 : i32
    %c1_i32_0 = arith.constant 1 : i32
    %1 = arith.muli %0, %c1_i32_0 : i32
    %c1_i32_1 = arith.constant 1 : i32
    %2 = arith.subi %1, %c1_i32_1 : i32
    %c0_i32 = arith.constant 0 : i32
    %c0_i32_2 = arith.constant 0 : i32
    return %c0_i32, %2 : i32, i32
  }
  func.func @transform_1(%arg0: i32) -> (i32, i32) {
    %c1_i32 = arith.constant 1 : i32
    %0 = arith.addi %arg0, %c1_i32 : i32
    %c0_i32 = arith.constant 0 : i32
    %c0_i32_0 = arith.constant 0 : i32
    return %c0_i32, %0 : i32, i32
  }
  func.func @transform_2(%arg0: i32) -> (i32, i32) {
    %c2_i32 = arith.constant 2 : i32
    %0 = arith.addi %arg0, %c2_i32 : i32
    %c1_i32 = arith.constant 1 : i32
    %1 = arith.muli %0, %c1_i32 : i32
    %c0_i32 = arith.constant 0 : i32
    %c0_i32_0 = arith.constant 0 : i32
    return %c0_i32, %1 : i32, i32
  }
  func.func @transform_3(%arg0: i32) -> (i32, i32, i32) {
    %c0_i32 = arith.constant 0 : i32
    %c0_i32_0 = arith.constant 0 : i32
    %c0_i32_1 = arith.constant 0 : i32
    %c0_i32_2 = arith.constant 0 : i32
    return %c0_i32, %c0_i32_0, %c0_i32_1 : i32, i32, i32
  }
  func.func @transform_4(%arg0: i32) -> (i32, i32) {
    %c0_i32 = arith.constant 0 : i32
    %c0_i32_0 = arith.constant 0 : i32
    %c0_i32_1 = arith.constant 0 : i32
    return %c0_i32, %c0_i32_0 : i32, i32
  }
  func.func @transform_5(%arg0: i32) -> (i32, i32) {
    %c0_i32 = arith.constant 0 : i32
    %c0_i32_0 = arith.constant 0 : i32
    %c0_i32_1 = arith.constant 0 : i32
    return %c0_i32, %c0_i32_0 : i32, i32
  }
  func.func @transform_6(%arg0: i32) -> (i32, i32) {
    %c0_i32 = arith.constant 0 : i32
    %c0_i32_0 = arith.constant 0 : i32
    return %c0_i32, %arg0 : i32, i32
  }
}

</mosaic_0001>

<llo_original>
// kernel: tpu_custom_call.1
$region0: #{tpu_custom_call.1}
  #allocation0 [shape = 'u32[]', space=smem, size = 0x4, offset = 0x4, fixed_abs, tag = 'smem constant byte address 0x4 - core index']
  #allocation1 [shape = 'u32[72,128]{1,0:T(1,128)}', space=vmem, size = 0x9000, scoped, tag = 'internal scratch']
  #allocation2 [shape = 'bf16[48,384]{1,0:T(8,128)(2,1)}', space=vmem, size = 0x9000, scoped, tag = 'scratch operand']
  %s0 = inlined_call_operand.hbm [shape: bf16[48,384], index: 0, kind: input, shape index: {}]
  %s1 = inlined_call_operand.hbm [shape: bf16[48,384], index: 1, kind: input, shape index: {}]
  %s2 = inlined_call_operand.hbm [shape: bf16[48,384], index: 2, kind: input, shape index: {}]
  %s3 = inlined_call_operand.hbm [shape: bf16[9,24,48], index: 3, kind: input, shape index: {}]
  %s4 = inlined_call_operand.vmem [shape: f32[2,24], index: 4, kind: input, shape index: {}]
  %s5 = inlined_call_operand.vmem [shape: f32[2,1], index: 5, kind: input, shape index: {}]
  %s6 = inlined_call_operand.hbm [shape: f32[2,128], index: 6, kind: output, shape index: {}]
  %s7 = sld [smem:[#allocation0]]
  $region50: #{tpu_custom_call.1} parent=0
    _
  %s9 = ssub.s32 1, %s7
  %s10 = scalar_select 0, %s9, %s7
  $region1: #{tpu_custom_call.1} parent=0
    #allocation3 [shape = 'u8[12288]{0}', space=vmem, size = 0x3000, scoped, tag = 'input window, operand 0, single buffered']
    #allocation4 [shape = 's32[1]{0}', space=sflag, size = 0x4, scoped, tag = 'scoped memory for tpu_custom_call.1']
    #allocation5 [shape = 's32[1]{0}', space=sflag, size = 0x4, scoped, tag = 'scoped memory for tpu_custom_call.1']
    #allocation6 [shape = 'u8[12288]{0}', space=vmem, size = 0x3000, scoped, tag = 'input window, operand 1, single buffered']
    #allocation7 [shape = 's32[1]{0}', space=sflag, size = 0x4, scoped, tag = 'scoped memory for tpu_custom_call.1']
    #allocation8 [shape = 'u8[12288]{0}', space=vmem, size = 0x3000, scoped, tag = 'input window, operand 2, single buffered']
    #allocation9 [shape = 'u8[55296]{0}', space=vmem, size = 0xd800, scoped, tag = 'input window, operand 3, single buffered']
    #allocation10 [shape = 's32[1]{0}', space=sflag, size = 0x4, scoped, tag = 'scoped memory for tpu_custom_call.1']
    #allocation11 [shape = 'u8[1024]{0}', space=vmem, size = 0x400, scoped, tag = 'output window, operand 0, single buffered']
    %11 = vsyncpa [#allocation4], 0
    %12 = vsyncpa [#allocation7], 0
    %13 = vsyncpa [#allocation10], 0
    %14 = vsyncpa [#allocation5], 0
    // Predicated region
    $region2: #{tpu_custom_call.1} parent=1 // pred_check
      _
    $region3: #{tpu_custom_call.1} parent=1 // pred_check_branch
      %16 = sbr.rel (0) target = $region5
    $region4: #{tpu_custom_call.1} parent=1 // pred_region
      %18 = vsyncadd [#allocation4], 0
      %s19 = sshll.u32 %s0, 4
      %s20 = int_to_ptr.hbm [resolvable:$true] %s19
      %s21 = sshll.u32 [#allocation3], 4
      %s22 = int_to_ptr.vmem [resolvable:$true] %s21
      %27 = dma.hbm_to_vmem [thread:$0]  %s20, 384, %s22, [#allocation4], 192, 64, 4
    $region5: #{tpu_custom_call.1} parent=1 // pred_fallthru
      _
    // Predicated region
    $region6: #{tpu_custom_call.1} parent=1 // pred_check
      _
    $region7: #{tpu_custom_call.1} parent=1 // pred_check_branch
      %29 = sbr.rel (0) target = $region9
    $region8: #{tpu_custom_call.1} parent=1 // pred_region
      %s30 = sadd.s32 0, 1
      %32 = vsyncadd [#allocation7], 0
      %s33 = smul.addr %s30, 4
      %s34 = scalar_lea.hbm %s1, %s33
      %s35 = sshll.u32 %s34, 4
      %s36 = int_to_ptr.hbm [resolvable:$true] %s35
      %s37 = sshll.u32 [#allocation6], 4
      %s38 = int_to_ptr.vmem [resolvable:$true] %s37
      %43 = dma.hbm_to_vmem [thread:$0]  %s36, 384, %s38, [#allocation7], 192, 64, 4
    $region9: #{tpu_custom_call.1} parent=1 // pred_fallthru
      _
    // Predicated region
    $region10: #{tpu_custom_call.1} parent=1 // pred_check
      _
    $region11: #{tpu_custom_call.1} parent=1 // pred_check_branch
      %45 = sbr.rel (0) target = $region13
    $region12: #{tpu_custom_call.1} parent=1 // pred_region
      %s46 = sadd.s32 0, 2
      %48 = vsyncadd [#allocation7], 0
      %s49 = smul.addr %s46, 4
      %s50 = scalar_lea.hbm %s2, %s49
      %s51 = sshll.u32 %s50, 4
      %s52 = int_to_ptr.hbm [resolvable:$true] %s51
      %s53 = sshll.u32 [#allocation8], 4
      %s54 = int_to_ptr.vmem [resolvable:$true] %s53
      %59 = dma.hbm_to_vmem [thread:$0]  %s52, 384, %s54, [#allocation7], 192, 64, 4
    $region13: #{tpu_custom_call.1} parent=1 // pred_fallthru
      _
    // Predicated region
    $region14: #{tpu_custom_call.1} parent=1 // pred_check
      _
    $region15: #{tpu_custom_call.1} parent=1 // pred_check_branch
      %61 = sbr.rel (0) target = $region17
    $region16: #{tpu_custom_call.1} parent=1 // pred_region
      %63 = vsyncadd [#allocation10], 0
      %s64 = sshll.u32 %s3, 4
      %s65 = int_to_ptr.hbm [resolvable:$true] %s64
      %s66 = sshll.u32 [#allocation9], 4
      %s67 = int_to_ptr.vmem [resolvable:$true] %s66
      %72 = dma.hbm_to_vmem [thread:$0]  %s65, 1728, %s67, [#allocation10], 64, 64, 4
    $region17: #{tpu_custom_call.1} parent=1 // pred_fallthru
      _
    // Predicated region
    $region18: #{tpu_custom_call.1} parent=1 // pred_check
      _
    $region19: #{tpu_custom_call.1} parent=1 // pred_check_branch
      %74 = sbr.rel (0) target = $region21
    $region20: #{tpu_custom_call.1} parent=1 // pred_region
      _
    $region21: #{tpu_custom_call.1} parent=1 // pred_fallthru
      _
    // Predicated region
    $region22: #{tpu_custom_call.1} parent=1 // pred_check
      _
    $region23: #{tpu_custom_call.1} parent=1 // pred_check_branch
      %76 = sbr.rel (0) target = $region25
    $region24: #{tpu_custom_call.1} parent=1 // pred_region
      _
    $region25: #{tpu_custom_call.1} parent=1 // pred_fallthru
      _
    // Predicated region
    $region26: #{tpu_custom_call.1} parent=1 // pred_check
      _
    $region27: #{tpu_custom_call.1} parent=1 // pred_check_branch
      %78 = sbr.rel (0) target = $region29
    $region28: #{tpu_custom_call.1} parent=1 // pred_region
      %80 = dma.done [#allocation4], 384
    $region29: #{tpu_custom_call.1} parent=1 // pred_fallthru
      _
    // Predicated region
    $region30: #{tpu_custom_call.1} parent=1 // pred_check
      _
    $region31: #{tpu_custom_call.1} parent=1 // pred_check_branch
      %82 = sbr.rel (0) target = $region33
    $region32: #{tpu_custom_call.1} parent=1 // pred_region
      %84 = dma.done [#allocation7], 384
    $region33: #{tpu_custom_call.1} parent=1 // pred_fallthru
      _
    // Predicated region
    $region34: #{tpu_custom_call.1} parent=1 // pred_check
      _
    $region35: #{tpu_custom_call.1} parent=1 // pred_check_branch
      %86 = sbr.rel (0) target = $region37
    $region36: #{tpu_custom_call.1} parent=1 // pred_region
      %88 = dma.done [#allocation7], 384
    $region37: #{tpu_custom_call.1} parent=1 // pred_fallthru
      _
    // Predicated region
    $region38: #{tpu_custom_call.1} parent=1 // pred_check
      _
    $region39: #{tpu_custom_call.1} parent=1 // pred_check_branch
      %90 = sbr.rel (0) target = $region41
    $region40: #{tpu_custom_call.1} parent=1 // pred_region
      %92 = dma.done [#allocation10], 1728
    $region41: #{tpu_custom_call.1} parent=1 // pred_fallthru
      _
    %s93 = sadd.s32 0, 1
    %s94 = sadd.s32 0, 2
    %v96 = vld [vmem:[#allocation3] sm:$0xf]
    %v97 = vld [vmem:[#allocation3 + $0x4] sm:$0xf]
    %v98 = vld [vmem:[#allocation3 + $0x8] sm:$0xf]
    %v99 = vld [vmem:[#allocation3 + $0xc] sm:$0xf]
    %v100 = vld [vmem:[#allocation3 + $0x10] sm:$0xf]
    %v101 = vld [vmem:[#allocation3 + $0x14] sm:$0xf]
    %102 = vst [vmem:[#allocation2] sm:$0xf] %v96
    %103 = vst [vmem:[#allocation2 + $0xc] sm:$0xf] %v97
    %104 = vst [vmem:[#allocation2 + $0x18] sm:$0xf] %v98
    %105 = vst [vmem:[#allocation2 + $0x24] sm:$0xf] %v99
    %106 = vst [vmem:[#allocation2 + $0x30] sm:$0xf] %v100
    %107 = vst [vmem:[#allocation2 + $0x3c] sm:$0xf] %v101
    %v108 = vld [vmem:[#allocation6] sm:$0xf]
    %v109 = vld [vmem:[#allocation6 + $0x4] sm:$0xf]
    %v110 = vld [vmem:[#allocation6 + $0x8] sm:$0xf]
    %v111 = vld [vmem:[#allocation6 + $0xc] sm:$0xf]
    %v112 = vld [vmem:[#allocation6 + $0x10] sm:$0xf]
    %v113 = vld [vmem:[#allocation6 + $0x14] sm:$0xf]
    %114 = vst [vmem:[#allocation2 + $0x4] sm:$0xf] %v108
    %115 = vst [vmem:[#allocation2 + $0x10] sm:$0xf] %v109
    %116 = vst [vmem:[#allocation2 + $0x1c] sm:$0xf] %v110
    %117 = vst [vmem:[#allocation2 + $0x28] sm:$0xf] %v111
    %118 = vst [vmem:[#allocation2 + $0x34] sm:$0xf] %v112
    %119 = vst [vmem:[#allocation2 + $0x40] sm:$0xf] %v113
    %v120 = vld [vmem:[#allocation8] sm:$0xf]
    %v121 = vld [vmem:[#allocation8 + $0x4] sm:$0xf]
    %v122 = vld [vmem:[#allocation8 + $0x8] sm:$0xf]
    %v123 = vld [vmem:[#allocation8 + $0xc] sm:$0xf]
    %v124 = vld [vmem:[#allocation8 + $0x10] sm:$0xf]
    %v125 = vld [vmem:[#allocation8 + $0x14] sm:$0xf]
    %126 = vst [vmem:[#allocation2 + $0x8] sm:$0xf] %v120
    %127 = vst [vmem:[#allocation2 + $0x14] sm:$0xf] %v121
    %128 = vst [vmem:[#allocation2 + $0x20] sm:$0xf] %v122
    %129 = vst [vmem:[#allocation2 + $0x2c] sm:$0xf] %v123
    %130 = vst [vmem:[#allocation2 + $0x38] sm:$0xf] %v124
    %131 = vst [vmem:[#allocation2 + $0x44] sm:$0xf] %v125
    %v132 = vld [vmem:[#allocation2] sm:$0xff]
    %v133 = vld [vmem:[#allocation2 + $0x8] sm:$0xf]
    %v134 = vld [vmem:[#allocation2 + $0xc] sm:$0xff]
    %v135 = vld [vmem:[#allocation2 + $0x14] sm:$0xf]
    %v136 = vld [vmem:[#allocation2 + $0x18] sm:$0xff]
    %v137 = vld [vmem:[#allocation2 + $0x20] sm:$0xf]
    %v138 = vld [vmem:[#allocation2 + $0x24] sm:$0xff]
    %v139 = vld [vmem:[#allocation2 + $0x2c] sm:$0xf]
    %v140 = vld [vmem:[#allocation2 + $0x30] sm:$0xff]
    %v141 = vld [vmem:[#allocation2 + $0x38] sm:$0xf]
    %v142 = vld [vmem:[#allocation2 + $0x3c] sm:$0xff]
    %v143 = vld [vmem:[#allocation2 + $0x44] sm:$0xf]
    %v144 = vld [vmem:[#allocation9] sm:$0xf]
    %v145 = vld [vmem:[#allocation9 + $0x4] sm:$0xf]
    %v146 = vld [vmem:[#allocation9 + $0x8] sm:$0xf]
    %s147 = scalar_lea.vmem [#allocation9], 12
    %v148 = vld [vmem:[%s147] sm:$0xf]
    %v149 = vld [vmem:[%s147 + $0x4] sm:$0xf]
    %v150 = vld [vmem:[%s147 + $0x8] sm:$0xf]
    %v154 = vunpack.c.l.b16 %v148
    %v155 = vunpack.c.l.b16 %v149
    %v156 = vunpack.c.l.b16 %v150
    %v157 = vpack.c.b16 %v155, %v154
    %v158 = vpack.c.b16 %v156, %v156
    %v165 = vunpack.c.l.b16 %v132
    %v166 = vunpack.c.h.b16 %v132
    %v167 = vunpack.c.l.b16 %v134
    %v168 = vunpack.c.h.b16 %v134
    %v169 = vunpack.c.l.b16 %v136
    %v170 = vunpack.c.h.b16 %v136
    %v171 = vunpack.c.l.b16 %v138
    %v172 = vunpack.c.h.b16 %v138
    %v173 = vunpack.c.l.b16 %v140
    %v174 = vunpack.c.h.b16 %v140
    %v175 = vunpack.c.l.b16 %v142
    %v176 = vunpack.c.h.b16 %v142
    %v177 = vpack.c.b16 %v167, %v165
    %v178 = vpack.c.b16 %v168, %v166
    %v179 = vpack.c.b16 %v171, %v169
    %v180 = vpack.c.b16 %v172, %v170
    %v181 = vpack.c.b16 %v175, %v173
    %v182 = vpack.c.b16 %v176, %v174
    %183 = vrot.lane.b32.xlu0 %v177, 7
    %v184 = vpop.permute.xlu0 %183
    %185 = vrot.lane.b32.xlu0 %v178, 7
    %v186 = vpop.permute.xlu0 %185
    %187 = vrot.lane.b32.xlu0 %v179, 7
    %v188 = vpop.permute.xlu0 %187
    %189 = vrot.lane.b32.xlu0 %v180, 7
    %v190 = vpop.permute.xlu0 %189
    %191 = vrot.lane.b32.xlu0 %v181, 7
    %v192 = vpop.permute.xlu0 %191
    %193 = vrot.lane.b32.xlu0 %v182, 7
    %v194 = vpop.permute.xlu0 %193
    %vm195 = vcmask 56320
    %v196 = vsel %vm195, %v184, %v186
    %v197 = vsel %vm195, %v188, %v190
    %v198 = vsel %vm195, %v192, %v194
    %vm202 = vcmask 392192
    %v204 = vsel %vm202, %v157, 0
    %v207 = vsel %vm202, %v158, 0
    %209 = vmatpush.bf16.msra.mxu0 0
    %210 = vmatpush.bf16.msra.mxu0 0
    %211 = vmatpush.bf16.msra.mxu0 0
    %212 = vmatpush.bf16.msra.mxu0 0
    %213 = vmatpush.bf16.msra.mxu0 0
    %214 = vmatpush.bf16.msra.mxu0 %v198
    %215 = vmatpush.bf16.msra.mxu0 %v197
    %216 = vmatpush.bf16.msra.mxu0 %v196
    %217 = vmatmul.bf16.gmra.mxu0 %v204
    %v218 = vpop.f32.mrf.mxu0
    %v219 = vadd.f32 0.0, %v218
    %v220 = vpop.f32.mrf.mxu0
    %v221 = vadd.f32 0.0, %v220
    %222 = vmatmul.bf16.gmra.mxu0 %v207
    %v223 = vpop.f32.mrf.mxu0
    %v224 = vadd.f32 0.0, %v223
    %v225 = vpop.f32.mrf.mxu0
    %226 = vdwg.mxu0
    %v230 = vunpack.c.l.b16 %v144
    %v231 = vunpack.c.l.b16 %v145
    %v232 = vunpack.c.l.b16 %v146
    %v233 = vpack.c.b16 %v231, %v230
    %v234 = vpack.c.b16 %v232, %v232
    %235 = vrot.lane.b32.xlu0 %v177, 8
    %v236 = vpop.permute.xlu0 %235
    %237 = vrot.lane.b32.xlu0 %v178, 8
    %v238 = vpop.permute.xlu0 %237
    %239 = vrot.lane.b32.xlu0 %v179, 8
    %v240 = vpop.permute.xlu0 %239
    %241 = vrot.lane.b32.xlu0 %v180, 8
    %v242 = vpop.permute.xlu0 %241
    %243 = vrot.lane.b32.xlu0 %v181, 8
    %v244 = vpop.permute.xlu0 %243
    %245 = vrot.lane.b32.xlu0 %v182, 8
    %v246 = vpop.permute.xlu0 %245
    %vm247 = vcmask 64512
    %v248 = vsel %vm247, %v236, %v238
    %v249 = vsel %vm247, %v240, %v242
    %v250 = vsel %vm247, %v244, %v246
    %v255 = vsel %vm202, %v233, 0
    %v258 = vsel %vm202, %v234, 0
    %260 = vmatpush.bf16.msra.mxu0 0
    %261 = vmatpush.bf16.msra.mxu0 0
    %262 = vmatpush.bf16.msra.mxu0 0
    %263 = vmatpush.bf16.msra.mxu0 0
    %264 = vmatpush.bf16.msra.mxu0 0
    %265 = vmatpush.bf16.msra.mxu0 %v250
    %266 = vmatpush.bf16.msra.mxu0 %v249
    %267 = vmatpush.bf16.msra.mxu0 %v248
    %268 = vmatmul.bf16.gmra.mxu0 %v255
    %v269 = vpop.f32.mrf.mxu0
    %v270 = vadd.f32 %v219, %v269
    %v271 = vpop.f32.mrf.mxu0
    %v272 = vadd.f32 %v221, %v271
    %273 = vmatmul.bf16.gmra.mxu0 %v258
    %v274 = vpop.f32.mrf.mxu0
    %v275 = vadd.f32 %v224, %v274
    %v276 = vpop.f32.mrf.mxu0
    %277 = vdwg.mxu0
    %s278 = scalar_lea.vmem [#allocation9], 24
    %v279 = vld [vmem:[%s278] sm:$0xf]
    %v280 = vld [vmem:[%s278 + $0x4] sm:$0xf]
    %v281 = vld [vmem:[%s278 + $0x8] sm:$0xf]
    %v285 = vunpack.c.l.b16 %v279
    %v286 = vunpack.c.l.b16 %v280
    %v287 = vunpack.c.l.b16 %v281
    %v288 = vpack.c.b16 %v286, %v285
    %v289 = vpack.c.b16 %v287, %v287
    %290 = vrot.lane.b32.xlu0 %v177, 6
    %v291 = vpop.permute.xlu0 %290
    %292 = vrot.lane.b32.xlu0 %v178, 6
    %v293 = vpop.permute.xlu0 %292
    %294 = vrot.lane.b32.xlu0 %v179, 6
    %v295 = vpop.permute.xlu0 %294
    %296 = vrot.lane.b32.xlu0 %v180, 6
    %v297 = vpop.permute.xlu0 %296
    %298 = vrot.lane.b32.xlu0 %v181, 6
    %v299 = vpop.permute.xlu0 %298
    %300 = vrot.lane.b32.xlu0 %v182, 6
    %v301 = vpop.permute.xlu0 %300
    %vm302 = vcmask 48128
    %v303 = vsel %vm302, %v291, %v293
    %v304 = vsel %vm302, %v295, %v297
    %v305 = vsel %vm302, %v299, %v301
    %v310 = vsel %vm202, %v288, 0
    %v313 = vsel %vm202, %v289, 0
    %315 = vmatpush.bf16.msra.mxu0 0
    %316 = vmatpush.bf16.msra.mxu0 0
    %317 = vmatpush.bf16.msra.mxu0 0
    %318 = vmatpush.bf16.msra.mxu0 0
    %319 = vmatpush.bf16.msra.mxu0 0
    %320 = vmatpush.bf16.msra.mxu0 %v305
    %321 = vmatpush.bf16.msra.mxu0 %v304
    %322 = vmatpush.bf16.msra.mxu0 %v303
    %323 = vmatmul.bf16.gmra.mxu0 %v310
    %v324 = vpop.f32.mrf.mxu0
    %v325 = vadd.f32 0.0, %v324
    %v326 = vpop.f32.mrf.mxu0
    %v327 = vadd.f32 0.0, %v326
    %328 = vmatmul.bf16.gmra.mxu0 %v313
    %v329 = vpop.f32.mrf.mxu0
    %v330 = vadd.f32 0.0, %v329
    %v331 = vpop.f32.mrf.mxu0
    %332 = vdwg.mxu0
    %v333 = vadd.f32 %v270, %v325
    %v334 = vadd.f32 %v272, %v327
    %v335 = vadd.f32 %v275, %v330
    %s336 = scalar_lea.vmem [#allocation9], 36
    %v337 = vld [vmem:[%s336] sm:$0xf]
    %v338 = vld [vmem:[%s336 + $0x4] sm:$0xf]
    %v339 = vld [vmem:[%s336 + $0x8] sm:$0xf]
    %v343 = vunpack.c.l.b16 %v337
    %v344 = vunpack.c.l.b16 %v338
    %v345 = vunpack.c.l.b16 %v339
    %v346 = vpack.c.b16 %v344, %v343
    %v347 = vpack.c.b16 %v345, %v345
    %348 = vrot.lane.b32.xlu0 %v177, 1
    %v349 = vpop.permute.xlu0 %348
    %350 = vrot.lane.b32.xlu0 %v178, 1
    %v351 = vpop.permute.xlu0 %350
    %352 = vrot.lane.b32.xlu0 %v179, 1
    %v353 = vpop.permute.xlu0 %352
    %354 = vrot.lane.b32.xlu0 %v180, 1
    %v355 = vpop.permute.xlu0 %354
    %356 = vrot.lane.b32.xlu0 %v181, 1
    %v357 = vpop.permute.xlu0 %356
    %358 = vrot.lane.b32.xlu0 %v182, 1
    %v359 = vpop.permute.xlu0 %358
    %vm360 = vcmask 7168
    %v361 = vsel %vm360, %v349, %v351
    %v362 = vsel %vm360, %v353, %v355
    %v363 = vsel %vm360, %v357, %v359
    %v368 = vsel %vm202, %v346, 0
    %v371 = vsel %vm202, %v347, 0
    %373 = vmatpush.bf16.msra.mxu0 0
    %374 = vmatpush.bf16.msra.mxu0 0
    %375 = vmatpush.bf16.msra.mxu0 0
    %376 = vmatpush.bf16.msra.mxu0 0
    %377 = vmatpush.bf16.msra.mxu0 0
    %378 = vmatpush.bf16.msra.mxu0 %v363
    %379 = vmatpush.bf16.msra.mxu0 %v362
    %380 = vmatpush.bf16.msra.mxu0 %v361
    %381 = vmatmul.bf16.gmra.mxu0 %v368
    %v382 = vpop.f32.mrf.mxu0
    %v383 = vadd.f32 0.0, %v382
    %v384 = vpop.f32.mrf.mxu0
    %v385 = vadd.f32 0.0, %v384
    %386 = vmatmul.bf16.gmra.mxu0 %v371
    %v387 = vpop.f32.mrf.mxu0
    %v388 = vadd.f32 0.0, %v387
    %v389 = vpop.f32.mrf.mxu0
    %390 = vdwg.mxu0
    %v391 = vadd.f32 %v333, %v383
    %v392 = vadd.f32 %v334, %v385
    %v393 = vadd.f32 %v335, %v388
    %s394 = scalar_lea.vmem [#allocation9], 48
    %v395 = vld [vmem:[%s394] sm:$0xf]
    %v396 = vld [vmem:[%s394 + $0x4] sm:$0xf]
    %v397 = vld [vmem:[%s394 + $0x8] sm:$0xf]
    %v401 = vunpack.c.l.b16 %v395
    %v402 = vunpack.c.l.b16 %v396
    %v403 = vunpack.c.l.b16 %v397
    %v404 = vpack.c.b16 %v402, %v401
    %v405 = vpack.c.b16 %v403, %v403
    %v410 = vsel %vm202, %v404, 0
    %v413 = vsel %vm202, %v405, 0
    %415 = vmatpush.bf16.msra.mxu0 0
    %416 = vmatpush.bf16.msra.mxu0 0
    %417 = vmatpush.bf16.msra.mxu0 0
    %418 = vmatpush.bf16.msra.mxu0 0
    %419 = vmatpush.bf16.msra.mxu0 0
    %420 = vmatpush.bf16.msra.mxu0 %v182
    %421 = vmatpush.bf16.msra.mxu0 %v180
    %422 = vmatpush.bf16.msra.mxu0 %v178
    %423 = vmatmul.bf16.gmra.mxu0 %v410
    %v424 = vpop.f32.mrf.mxu0
    %v425 = vadd.f32 0.0, %v424
    %v426 = vpop.f32.mrf.mxu0
    %v427 = vadd.f32 0.0, %v426
    %428 = vmatmul.bf16.gmra.mxu0 %v413
    %v429 = vpop.f32.mrf.mxu0
    %v430 = vadd.f32 0.0, %v429
    %v431 = vpop.f32.mrf.mxu0
    %432 = vdwg.mxu0
    %v433 = vadd.f32 %v391, %v425
    %v434 = vadd.f32 %v392, %v427
    %v435 = vadd.f32 %v393, %v430
    %s436 = scalar_lea.vmem [#allocation9], 60
    %v437 = vld [vmem:[%s436] sm:$0xf]
    %v438 = vld [vmem:[%s436 + $0x4] sm:$0xf]
    %v439 = vld [vmem:[%s436 + $0x8] sm:$0xf]
    %v443 = vunpack.c.l.b16 %v437
    %v444 = vunpack.c.l.b16 %v438
    %v445 = vunpack.c.l.b16 %v439
    %v446 = vpack.c.b16 %v444, %v443
    %v447 = vpack.c.b16 %v445, %v445
    %v454 = vunpack.c.l.b16 %v133
    %v455 = vunpack.c.l.b16 %v135
    %v456 = vunpack.c.l.b16 %v137
    %v457 = vunpack.c.l.b16 %v139
    %v458 = vunpack.c.l.b16 %v141
    %v459 = vunpack.c.l.b16 %v143
    %v460 = vpack.c.b16 %v455, %v454
    %v461 = vpack.c.b16 %v457, %v456
    %v462 = vpack.c.b16 %v459, %v458
    %463 = vrot.lane.b32.xlu0 %v178, 127
    %v464 = vpop.permute.xlu0 %463
    %465 = vrot.lane.b32.xlu0 %v460, 127
    %v466 = vpop.permute.xlu0 %465
    %467 = vrot.lane.b32.xlu0 %v180, 127
    %v468 = vpop.permute.xlu0 %467
    %469 = vrot.lane.b32.xlu0 %v461, 127
    %v470 = vpop.permute.xlu0 %469
    %471 = vrot.lane.b32.xlu0 %v182, 127
    %v472 = vpop.permute.xlu0 %471
    %473 = vrot.lane.b32.xlu0 %v462, 127
    %v474 = vpop.permute.xlu0 %473
    %vm475 = vcmask 1039360
    %v476 = vsel %vm475, %v464, %v466
    %v477 = vsel %vm475, %v468, %v470
    %v478 = vsel %vm475, %v472, %v474
    %v483 = vsel %vm202, %v446, 0
    %v486 = vsel %vm202, %v447, 0
    %488 = vmatpush.bf16.msra.mxu0 0
    %489 = vmatpush.bf16.msra.mxu0 0
    %490 = vmatpush.bf16.msra.mxu0 0
    %491 = vmatpush.bf16.msra.mxu0 0
    %492 = vmatpush.bf16.msra.mxu0 0
    %493 = vmatpush.bf16.msra.mxu0 %v478
    %494 = vmatpush.bf16.msra.mxu0 %v477
    %495 = vmatpush.bf16.msra.mxu0 %v476
    %496 = vmatmul.bf16.gmra.mxu0 %v483
    %v497 = vpop.f32.mrf.mxu0
    %v498 = vadd.f32 0.0, %v497
    %v499 = vpop.f32.mrf.mxu0
    %v500 = vadd.f32 0.0, %v499
    %501 = vmatmul.bf16.gmra.mxu0 %v486
    %v502 = vpop.f32.mrf.mxu0
    %v503 = vadd.f32 0.0, %v502
    %v504 = vpop.f32.mrf.mxu0
    %505 = vdwg.mxu0
    %v506 = vadd.f32 %v433, %v498
    %v507 = vadd.f32 %v434, %v500
    %v508 = vadd.f32 %v435, %v503
    %s509 = scalar_lea.vmem [#allocation9], 72
    %v510 = vld [vmem:[%s509] sm:$0xf]
    %v511 = vld [vmem:[%s509 + $0x4] sm:$0xf]
    %v512 = vld [vmem:[%s509 + $0x8] sm:$0xf]
    %v516 = vunpack.c.l.b16 %v510
    %v517 = vunpack.c.l.b16 %v511
    %v518 = vunpack.c.l.b16 %v512
    %v519 = vpack.c.b16 %v517, %v516
    %v520 = vpack.c.b16 %v518, %v518
    %521 = vrot.lane.b32.xlu0 %v178, 122
    %v522 = vpop.permute.xlu0 %521
    %523 = vrot.lane.b32.xlu0 %v460, 122
    %v524 = vpop.permute.xlu0 %523
    %525 = vrot.lane.b32.xlu0 %v180, 122
    %v526 = vpop.permute.xlu0 %525
    %527 = vrot.lane.b32.xlu0 %v461, 122
    %v528 = vpop.permute.xlu0 %527
    %529 = vrot.lane.b32.xlu0 %v182, 122
    %v530 = vpop.permute.xlu0 %529
    %531 = vrot.lane.b32.xlu0 %v462, 122
    %v532 = vpop.permute.xlu0 %531
    %vm533 = vcmask 998400
    %v534 = vsel %vm533, %v522, %v524
    %v535 = vsel %vm533, %v526, %v528
    %v536 = vsel %vm533, %v530, %v532
    %v541 = vsel %vm202, %v519, 0
    %v544 = vsel %vm202, %v520, 0
    %546 = vmatpush.bf16.msra.mxu0 0
    %547 = vmatpush.bf16.msra.mxu0 0
    %548 = vmatpush.bf16.msra.mxu0 0
    %549 = vmatpush.bf16.msra.mxu0 0
    %550 = vmatpush.bf16.msra.mxu0 0
    %551 = vmatpush.bf16.msra.mxu0 %v536
    %552 = vmatpush.bf16.msra.mxu0 %v535
    %553 = vmatpush.bf16.msra.mxu0 %v534
    %554 = vmatmul.bf16.gmra.mxu0 %v541
    %v555 = vpop.f32.mrf.mxu0
    %v556 = vadd.f32 0.0, %v555
    %v557 = vpop.f32.mrf.mxu0
    %v558 = vadd.f32 0.0, %v557
    %559 = vmatmul.bf16.gmra.mxu0 %v544
    %v560 = vpop.f32.mrf.mxu0
    %v561 = vadd.f32 0.0, %v560
    %v562 = vpop.f32.mrf.mxu0
    %563 = vdwg.mxu0
    %v564 = vadd.f32 %v506, %v556
    %v565 = vadd.f32 %v507, %v558
    %v566 = vadd.f32 %v508, %v561
    %s567 = scalar_lea.vmem [#allocation9], 84
    %v568 = vld [vmem:[%s567] sm:$0xf]
    %v569 = vld [vmem:[%s567 + $0x4] sm:$0xf]
    %v570 = vld [vmem:[%s567 + $0x8] sm:$0xf]
    %v574 = vunpack.c.l.b16 %v568
    %v575 = vunpack.c.l.b16 %v569
    %v576 = vunpack.c.l.b16 %v570
    %v577 = vpack.c.b16 %v575, %v574
    %v578 = vpack.c.b16 %v576, %v576
    %579 = vrot.lane.b32.xlu0 %v178, 121
    %v580 = vpop.permute.xlu0 %579
    %581 = vrot.lane.b32.xlu0 %v460, 121
    %v582 = vpop.permute.xlu0 %581
    %583 = vrot.lane.b32.xlu0 %v180, 121
    %v584 = vpop.permute.xlu0 %583
    %585 = vrot.lane.b32.xlu0 %v461, 121
    %v586 = vpop.permute.xlu0 %585
    %587 = vrot.lane.b32.xlu0 %v182, 121
    %v588 = vpop.permute.xlu0 %587
    %589 = vrot.lane.b32.xlu0 %v462, 121
    %v590 = vpop.permute.xlu0 %589
    %vm591 = vcmask 990208
    %v592 = vsel %vm591, %v580, %v582
    %v593 = vsel %vm591, %v584, %v586
    %v594 = vsel %vm591, %v588, %v590
    %v599 = vsel %vm202, %v577, 0
    %v602 = vsel %vm202, %v578, 0
    %604 = vmatpush.bf16.msra.mxu0 0
    %605 = vmatpush.bf16.msra.mxu0 0
    %606 = vmatpush.bf16.msra.mxu0 0
    %607 = vmatpush.bf16.msra.mxu0 0
    %608 = vmatpush.bf16.msra.mxu0 0
    %609 = vmatpush.bf16.msra.mxu0 %v594
    %610 = vmatpush.bf16.msra.mxu0 %v593
    %611 = vmatpush.bf16.msra.mxu0 %v592
    %612 = vmatmul.bf16.gmra.mxu0 %v599
    %v613 = vpop.f32.mrf.mxu0
    %v614 = vadd.f32 0.0, %v613
    %v615 = vpop.f32.mrf.mxu0
    %v616 = vadd.f32 0.0, %v615
    %617 = vmatmul.bf16.gmra.mxu0 %v602
    %v618 = vpop.f32.mrf.mxu0
    %v619 = vadd.f32 0.0, %v618
    %v620 = vpop.f32.mrf.mxu0
    %621 = vdwg.mxu0
    %v622 = vadd.f32 %v564, %v614
    %v623 = vadd.f32 %v565, %v616
    %v624 = vadd.f32 %v566, %v619
    %s625 = scalar_lea.vmem [#allocation9], 96
    %v626 = vld [vmem:[%s625] sm:$0xf]
    %v627 = vld [vmem:[%s625 + $0x4] sm:$0xf]
    %v628 = vld [vmem:[%s625 + $0x8] sm:$0xf]
    %v632 = vunpack.c.l.b16 %v626
    %v633 = vunpack.c.l.b16 %v627
    %v634 = vunpack.c.l.b16 %v628
    %v635 = vpack.c.b16 %v633, %v632
    %v636 = vpack.c.b16 %v634, %v634
    %637 = vrot.lane.b32.xlu0 %v178, 120
    %v638 = vpop.permute.xlu0 %637
    %639 = vrot.lane.b32.xlu0 %v460, 120
    %v640 = vpop.permute.xlu0 %639
    %641 = vrot.lane.b32.xlu0 %v180, 120
    %v642 = vpop.permute.xlu0 %641
    %643 = vrot.lane.b32.xlu0 %v461, 120
    %v644 = vpop.permute.xlu0 %643
    %645 = vrot.lane.b32.xlu0 %v182, 120
    %v646 = vpop.permute.xlu0 %645
    %647 = vrot.lane.b32.xlu0 %v462, 120
    %v648 = vpop.permute.xlu0 %647
    %vm649 = vcmask 982016
    %v650 = vsel %vm649, %v638, %v640
    %v651 = vsel %vm649, %v642, %v644
    %v652 = vsel %vm649, %v646, %v648
    %v657 = vsel %vm202, %v635, 0
    %v660 = vsel %vm202, %v636, 0
    %662 = vmatpush.bf16.msra.mxu0 0
    %663 = vmatpush.bf16.msra.mxu0 0
    %664 = vmatpush.bf16.msra.mxu0 0
    %665 = vmatpush.bf16.msra.mxu0 0
    %666 = vmatpush.bf16.msra.mxu0 0
    %667 = vmatpush.bf16.msra.mxu0 %v652
    %668 = vmatpush.bf16.msra.mxu0 %v651
    %669 = vmatpush.bf16.msra.mxu0 %v650
    %670 = vmatmul.bf16.gmra.mxu0 %v657
    %v671 = vpop.f32.mrf.mxu0
    %v672 = vadd.f32 0.0, %v671
    %v673 = vpop.f32.mrf.mxu0
    %v674 = vadd.f32 0.0, %v673
    %675 = vmatmul.bf16.gmra.mxu0 %v660
    %v676 = vpop.f32.mrf.mxu0
    %v677 = vadd.f32 0.0, %v676
    %v678 = vpop.f32.mrf.mxu0
    %679 = vdwg.mxu0
    %v680 = vadd.f32 %v622, %v672
    %v681 = vadd.f32 %v623, %v674
    %v682 = vadd.f32 %v624, %v677
    %v683 = vmul.f32 %v680, 0.5
    %v684 = vmul.f32 %v681, 0.5
    %v685 = vmul.f32 %v682, 0.5
    %v686 = vmul.f32 %v680, 0.70710677
    %v687 = vmul.f32 %v681, 0.70710677
    %v688 = vmul.f32 %v682, 0.70710677
    %v689 = vmul.f32 %v686, %v686
    %v690 = vmin.f32 16.0, %v689
    %v691 = vmul.f32 %v690, 2.1237322e-06
    %v692 = vadd.f32 %v691, 0.00028619796
    %v693 = vmul.f32 %v690, %v692
    %v694 = vadd.f32 %v693, 0.0036580483
    %v695 = vmul.f32 %v690, %v694
    %v696 = vadd.f32 %v695, 0.05243302
    %v697 = vmul.f32 %v690, %v696
    %v698 = vadd.f32 %v697, 0.18741608
    %v699 = vmul.f32 %v690, %v698
    %v700 = vadd.f32 %v699, 1.1283791
    %v701 = vmul.f32 %v686, %v700
    %v702 = vmul.f32 %v690, 3.8918573e-05
    %v703 = vadd.f32 %v702, 0.001143296
    %v704 = vmul.f32 %v690, %v703
    %v705 = vadd.f32 %v704, 0.014752088
    %v706 = vmul.f32 %v690, %v705
    %v707 = vadd.f32 %v706, 0.112945676
    %v708 = vmul.f32 %v690, %v707
    %v709 = vadd.f32 %v708, 0.4994258
    %v710 = vmul.f32 %v690, %v709
    %v711 = vadd.f32 %v710, 1.0
    %v712 = vrcp.pop %v711
    %v713 = vmul.f32 %v711, %v712
    %v714 = vsub.f32 1.0, %v713
    %v715 = vmul.f32 %v712, %v714
    %v716 = vadd.f32 %v712, %v715
    %vm717 = vweird.f32 %v711
    %vm718 = vweird.f32 %v712
    %vm719 = vmor %vm717, %vm718
    %v720 = vsel %vm719, %v712, %v716
    %v721 = vand.u32 2147483647, %v711
    %vm722 = vcmp.eq.f32.partialorder %v721, 8.507059e+37
    %v723 = vand.u32 %v711, 2147483648
    %v724 = vor.u32 1.1754944e-38, %v723
    %v725 = vsel %vm722, %v724, %v720
    %v726 = vmul.f32 %v701, %v725
    %v727 = vmin.f32 %v726, 1.0
    %v728 = vmax.f32 %v727, -1.0
    %v729 = vmul.f32 %v687, %v687
    %v730 = vmin.f32 16.0, %v729
    %v731 = vmul.f32 %v730, 2.1237322e-06
    %v732 = vadd.f32 %v731, 0.00028619796
    %v733 = vmul.f32 %v730, %v732
    %v734 = vadd.f32 %v733, 0.0036580483
    %v735 = vmul.f32 %v730, %v734
    %v736 = vadd.f32 %v735, 0.05243302
    %v737 = vmul.f32 %v730, %v736
    %v738 = vadd.f32 %v737, 0.18741608
    %v739 = vmul.f32 %v730, %v738
    %v740 = vadd.f32 %v739, 1.1283791
    %v741 = vmul.f32 %v687, %v740
    %v742 = vmul.f32 %v730, 3.8918573e-05
    %v743 = vadd.f32 %v742, 0.001143296
    %v744 = vmul.f32 %v730, %v743
    %v745 = vadd.f32 %v744, 0.014752088
    %v746 = vmul.f32 %v730, %v745
    %v747 = vadd.f32 %v746, 0.112945676
    %v748 = vmul.f32 %v730, %v747
    %v749 = vadd.f32 %v748, 0.4994258
    %v750 = vmul.f32 %v730, %v749
    %v751 = vadd.f32 %v750, 1.0
    %v752 = vrcp.pop %v751
    %v753 = vmul.f32 %v751, %v752
    %v754 = vsub.f32 1.0, %v753
    %v755 = vmul.f32 %v752, %v754
    %v756 = vadd.f32 %v752, %v755
    %vm757 = vweird.f32 %v751
    %vm758 = vweird.f32 %v752
    %vm759 = vmor %vm757, %vm758
    %v760 = vsel %vm759, %v752, %v756
    %v761 = vand.u32 2147483647, %v751
    %vm762 = vcmp.eq.f32.partialorder %v761, 8.507059e+37
    %v763 = vand.u32 %v751, 2147483648
    %v764 = vor.u32 1.1754944e-38, %v763
    %v765 = vsel %vm762, %v764, %v760
    %v766 = vmul.f32 %v741, %v765
    %v767 = vmin.f32 %v766, 1.0
    %v768 = vmax.f32 %v767, -1.0
    %v769 = vmul.f32 %v688, %v688
    %v770 = vmin.f32 16.0, %v769
    %v771 = vmul.f32 %v770, 2.1237322e-06
    %v772 = vadd.f32 %v771, 0.00028619796
    %v773 = vmul.f32 %v770, %v772
    %v774 = vadd.f32 %v773, 0.0036580483
    %v775 = vmul.f32 %v770, %v774
    %v776 = vadd.f32 %v775, 0.05243302
    %v777 = vmul.f32 %v770, %v776
    %v778 = vadd.f32 %v777, 0.18741608
    %v779 = vmul.f32 %v770, %v778
    %v780 = vadd.f32 %v779, 1.1283791
    %v781 = vmul.f32 %v688, %v780
    %v782 = vmul.f32 %v770, 3.8918573e-05
    %v783 = vadd.f32 %v782, 0.001143296
    %v784 = vmul.f32 %v770, %v783
    %v785 = vadd.f32 %v784, 0.014752088
    %v786 = vmul.f32 %v770, %v785
    %v787 = vadd.f32 %v786, 0.112945676
    %v788 = vmul.f32 %v770, %v787
    %v789 = vadd.f32 %v788, 0.4994258
    %v790 = vmul.f32 %v770, %v789
    %v791 = vadd.f32 %v790, 1.0
    %v792 = vrcp.pop %v791
    %v793 = vmul.f32 %v791, %v792
    %v794 = vsub.f32 1.0, %v793
    %v795 = vmul.f32 %v792, %v794
    %v796 = vadd.f32 %v792, %v795
    %vm797 = vweird.f32 %v791
    %vm798 = vweird.f32 %v792
    %vm799 = vmor %vm797, %vm798
    %v800 = vsel %vm799, %v792, %v796
    %v801 = vand.u32 2147483647, %v791
    %vm802 = vcmp.eq.f32.partialorder %v801, 8.507059e+37
    %v803 = vand.u32 %v791, 2147483648
    %v804 = vor.u32 1.1754944e-38, %v803
    %v805 = vsel %vm802, %v804, %v800
    %v806 = vmul.f32 %v781, %v805
    %v807 = vmin.f32 %v806, 1.0
    %v808 = vmax.f32 %v807, -1.0
    %v809 = vadd.f32 %v728, 1.0
    %v810 = vadd.f32 %v768, 1.0
    %v811 = vadd.f32 %v808, 1.0
    %v812 = vmul.f32 %v683, %v809
    %v813 = vmul.f32 %v684, %v810
    %v814 = vmul.f32 %v685, %v811
    %v815 = vld [vmem:[%s4] sm:$0x3]
    %v816 = vld [vmem:[%s5] sm:$0x3]
    %818 = vset.pattern.permute.xlu0 0
    %819 = vperm.xlu0 %818, %v816
    %v820 = vpop.permute.xlu0 %819
    %vm822 = vcmask 195584
    %v824 = vsel %vm822, %v815, 0
    %826 = vmatpush.msra.mxu0 0.0
    %827 = vmatpush.msra.mxu0 0.0
    %828 = vmatpush.msra.mxu0 0.0
    %829 = vmatpush.msra.mxu0 0.0
    %830 = vmatpush.msra.mxu0 0.0
    %831 = vmatpush.msra.mxu0 0.0
    %832 = vmatpush.msra.mxu0 0.0
    %833 = vmatpush.msra.mxu0 0.0
    %834 = vmatpush.msra.mxu0 0.0
    %835 = vmatpush.msra.mxu0 0.0
    %836 = vmatpush.msra.mxu0 0.0
    %837 = vmatpush.msra.mxu0 0.0
    %838 = vmatpush.msra.mxu0 0.0
    %839 = vmatpush.msra.mxu0 %v814
    %840 = vmatpush.msra.mxu0 %v813
    %841 = vmatpush.msra.mxu0 %v812
    %842 = vmatmul.f32.gmra.mxu0 %v824
    %v843 = vpop.f32.mrf.mxu0
    %v844 = vadd.f32 %v820, %v843
    %845 = vdwg.mxu0
    %846 = vst [vmem:[#allocation11] sm:$0x3] %v844
    // Predicated region
    $region42: #{tpu_custom_call.1} parent=1 // pred_check
      _
    $region43: #{tpu_custom_call.1} parent=1 // pred_check_branch
      %848 = sbr.rel (0) target = $region45
    $region44: #{tpu_custom_call.1} parent=1 // pred_region
      %850 = vsyncadd [#allocation5], 0
      %s852 = sshll.u32 [#allocation11], 4
      %s853 = int_to_ptr.vmem [resolvable:$true] %s852
      %s854 = sshll.u32 %s6, 4
      %s855 = int_to_ptr.hbm [resolvable:$true] %s854
      %857 = dma.vmem_to_hbm [thread:$0]  %s853, 32, %s855, [#allocation5]
    $region45: #{tpu_custom_call.1} parent=1 // pred_fallthru
      _
    // Predicated region
    $region46: #{tpu_custom_call.1} parent=1 // pred_check
      _
    $region47: #{tpu_custom_call.1} parent=1 // pred_check_branch
      %859 = sbr.rel (0) target = $region49
    $region48: #{tpu_custom_call.1} parent=1 // pred_region
      %861 = dma.done [#allocation5], 32
    $region49: #{tpu_custom_call.1} parent=1 // pred_fallthru
      _
    %862 = vsyncpa [#allocation4], 1
    %863 = vsyncpa [#allocation7], 1
    %864 = vsyncpa [#allocation10], 1
    %865 = vsyncpa [#allocation5], 1

</llo_original>
